<compile_context>
chip_gen: v7x
topology: tpu7x:2x2x1
jax: 0.10.0
libtpu: 0.0.40
codegen_flags: <defaults>
</compile_context>

<pallas_src>
import functools

import jax
import jax.numpy as jnp
from jax.experimental import pallas as pl
from jax.experimental.pallas import tpu as pltpu


def _cw_tile_kernel(conf_ref, x_ref, tgt_ref, partial_ref, *, n_rows, tile_rows):
    """One batch tile of the CW loss.

    conf_ref    : (1,)        f32  SMEM  confidence margin
    x_ref       : (TB, C)     any  VMEM  logits tile (cast to f32 on-chip)
    tgt_ref     : (TB, 1)     i32  VMEM  true labels tile
    partial_ref : (1, 8, 128) f32  VMEM  this tile's partial hinge sum
                                         (broadcast; wrapper reads [:, 0, 0])
    """
    i = pl.program_id(0)
    x = x_ref[...].astype(jnp.float32)          # cast in-kernel (bf16-friendly)
    tgt = tgt_ref[...]                          # (TB, 1) int32
    tb, c = x.shape

    conf = conf_ref[0]

    # one-hot compare via class-index iota (no gather needed)
    class_ids = jax.lax.broadcasted_iota(jnp.int32, (tb, c), 1)
    is_label = class_ids == tgt                                    # (TB, C) bool

    correct = jnp.sum(jnp.where(is_label, x, 0.0), axis=1, keepdims=True)
    # NOTE: matches the PyTorch quirk -- the correct-class slot is *zeroed*
    # before the max, so wrong_logit can be 0 when all other logits are < 0.
    wrong = jnp.max(jnp.where(is_label, 0.0, x), axis=1, keepdims=True)

    hinge = jnp.maximum(correct - wrong + conf, 0.0)               # (TB, 1)

    # mask rows past the true batch size (ragged last tile reads undefined data)
    row_ids = i * tile_rows + jax.lax.broadcasted_iota(jnp.int32, (tb, 1), 0)
    hinge = jnp.where(row_ids < n_rows, hinge, 0.0)

    tile_sum = jnp.sum(hinge)
    partial_ref[...] = jnp.broadcast_to(tile_sum, partial_ref.shape)


def _round_up(x, m):
    return ((x + m - 1) // m) * m


def _pick_tile_rows(batch, num_classes, itemsize,
                    vmem_budget_bytes=8 * 1024 * 1024):
    """Largest multiple-of-8 row tile whose double-buffered inputs fit budget."""
    bytes_per_row = num_classes * itemsize + 4       # logits row + int32 target
    tb = vmem_budget_bytes // (2 * bytes_per_row)    # x2 for double-buffering
    tb = max(8, min(int(tb), 2048))
    tb -= tb % 8
    tb = min(tb, _round_up(batch, 8))
    return max(tb, 8)


def carlini_wagner_loss(logits, target, conf=50.0, *, tile_rows=None):
    """logits: (B, C) float, target: (B,) int  ->  scalar f32 CW loss."""
    B, C = logits.shape
    tgt2d = target.astype(jnp.int32).reshape(B, 1)
    conf_arr = jnp.asarray([conf], dtype=jnp.float32)

    itemsize = jnp.dtype(logits.dtype).itemsize
    tb = tile_rows if tile_rows is not None else _pick_tile_rows(B, C, itemsize)
    n_tiles = (B + tb - 1) // tb

    kernel = functools.partial(_cw_tile_kernel, n_rows=B, tile_rows=tb)

    partials = pl.pallas_call(
        kernel,
        out_shape=jax.ShapeDtypeStruct((n_tiles, 8, 128), jnp.float32),
        grid=(n_tiles,),
        in_specs=[
            pl.BlockSpec(memory_space=pltpu.MemorySpace.SMEM),     # conf scalar
            pl.BlockSpec((tb, C), lambda i: (i, 0)),               # logits tile
            pl.BlockSpec((tb, 1), lambda i: (i, 0)),               # targets tile
        ],
        out_specs=pl.BlockSpec((1, 8, 128), lambda i: (i, 0, 0)),
        compiler_params=pltpu.CompilerParams(
            dimension_semantics=("parallel",)),
    )(conf_arr, logits, tgt2d)

    # Tiny host-side reduction over per-tile partials (also merges the
    # per-core partial sums when the grid is sharded across TensorCores).
    return -jnp.sum(partials[:, 0, 0])


def _reference_loss(logits, target, conf=50.0):
    """Pure-JAX reference mirroring the PyTorch forward."""
    num_classes = logits.shape[1]
    mask = jax.nn.one_hot(target, num_classes, dtype=jnp.float32)
    x = logits.astype(jnp.float32)
    correct = jnp.sum(mask * x, axis=1)
    wrong = jnp.max((1.0 - mask) * x, axis=1)
    return -jnp.sum(jax.nn.relu(correct - wrong + conf))


if __name__ == "__main__":
    key = jax.random.PRNGKey(0)
    kx, kt, kx2, kt2, kx3, kt3 = jax.random.split(key, 6)

    # case 1: small exact-fit batch (B is a multiple of the row tile)
    B, C = 8, 16
    logits = jax.random.normal(kx, (B, C), dtype=jnp.float32) * 5.0
    target = jax.random.randint(kt, (B,), 0, C, dtype=jnp.int32)

    loss = carlini_wagner_loss(logits, target, conf=50.0)
    jax.block_until_ready(loss)
    ref = _reference_loss(logits, target, conf=50.0)
    assert jnp.allclose(loss, ref, atol=1e-4, rtol=1e-5), (loss, ref)

    # case 2: ragged batch across several tiles (exercises the in-kernel row
    # mask and the parallel partial-sum grid)
    B2, C2 = 20, 16
    logits2 = jax.random.normal(kx2, (B2, C2), dtype=jnp.float32) * 5.0
    target2 = jax.random.randint(kt2, (B2,), 0, C2, dtype=jnp.int32)

    loss2 = carlini_wagner_loss(logits2, target2, conf=50.0, tile_rows=8)
    jax.block_until_ready(loss2)
    ref2 = _reference_loss(logits2, target2, conf=50.0)
    assert jnp.allclose(loss2, ref2, atol=1e-4, rtol=1e-5), (loss2, ref2)

    # case 3: bf16 logits flow through the kernel unconverted (cast on-chip)
    B3, C3 = 24, 32
    logits3 = (jax.random.normal(kx3, (B3, C3), dtype=jnp.float32) * 5.0
               ).astype(jnp.bfloat16)
    target3 = jax.random.randint(kt3, (B3,), 0, C3, dtype=jnp.int32)

    loss3 = carlini_wagner_loss(logits3, target3, conf=50.0, tile_rows=16)
    jax.block_until_ready(loss3)
    ref3 = _reference_loss(logits3, target3, conf=50.0)
    assert jnp.allclose(loss3, ref3, atol=1e-2, rtol=1e-2), (loss3, ref3)

    print("KERNEL_OK")
</pallas_src>

<mosaic_0001>
module attributes {stable_mosaic.version = 11 : i64} {
  func.func @_cw_tile_kernel(%arg0: i32, %arg1: memref<1xf32, #tpu.memory_space<smem>>, %arg2: memref<8x16xf32, #tpu.memory_space<vmem>>, %arg3: memref<8x1xi32, #tpu.memory_space<vmem>>, %arg4: memref<1x8x128xf32, #tpu.memory_space<vmem>>) attributes {dimension_semantics = [#tpu.dimension_semantics<parallel>], iteration_bounds = array<i64: 1>, scalar_prefetch = 0 : i64, scratch_operands = 0 : i64, tpu.core_type = #tpu.core_type<tc>, window_params = [{transform_indices = @transform_0, window_bounds = array<i64: 1>}, {transform_indices = @transform_1, window_bounds = array<i64: 8, 16>}, {transform_indices = @transform_2, window_bounds = array<i64: 8, 1>}, {transform_indices = @transform_3, window_bounds = array<i64: 1, 8, 128>}]} {
    %c0 = arith.constant 0 : index
    %c0_0 = arith.constant 0 : index
    %0 = vector.load %arg2[%c0, %c0_0] : memref<8x16xf32, #tpu.memory_space<vmem>>, vector<8x16xf32>
    %c0_1 = arith.constant 0 : index
    %c0_2 = arith.constant 0 : index
    %1 = vector.load %arg3[%c0_1, %c0_2] : memref<8x1xi32, #tpu.memory_space<vmem>>, vector<8x1xi32>
    %c0_3 = arith.constant 0 : index
    %2 = memref.load %arg1[%c0_3] : memref<1xf32, #tpu.memory_space<smem>>
    %3 = tpu.iota {dimensions = array<i32: 1>} : vector<8x16xi32>
    %4 = vector.broadcast %1 : vector<8x1xi32> to vector<8x16xi32>
    %5 = arith.cmpi eq, %3, %4 : vector<8x16xi32>
    %cst = arith.constant 0.000000e+00 : f32
    %6 = vector.broadcast %cst : f32 to vector<8x16xf32>
    %7 = arith.select %5, %0, %6 : vector<8x16xi1>, vector<8x16xf32>
    %cst_4 = arith.constant dense<0.000000e+00> : vector<8xf32>
    %8 = vector.multi_reduction <add>, %7, %cst_4 [1] : vector<8x16xf32> to vector<8xf32>
    %9 = vector.shape_cast %8 : vector<8xf32> to vector<8x1xf32>
    %cst_5 = arith.constant 0.000000e+00 : f32
    %10 = vector.broadcast %cst_5 : f32 to vector<8x16xf32>
    %11 = arith.select %5, %10, %0 : vector<8x16xi1>, vector<8x16xf32>
    %cst_6 = arith.constant dense<0xFF800000> : vector<8xf32>
    %12 = vector.multi_reduction <maximumf>, %11, %cst_6 [1] : vector<8x16xf32> to vector<8xf32>
    %13 = vector.shape_cast %12 : vector<8xf32> to vector<8x1xf32>
    %14 = arith.subf %9, %13 : vector<8x1xf32>
    %15 = vector.broadcast %2 : f32 to vector<8x1xf32>
    %16 = arith.addf %14, %15 : vector<8x1xf32>
    %cst_7 = arith.constant 0.000000e+00 : f32
    %17 = vector.broadcast %cst_7 : f32 to vector<8x1xf32>
    %18 = arith.maximumf %16, %17 : vector<8x1xf32>
    %c8_i32 = arith.constant 8 : i32
    %19 = arith.muli %arg0, %c8_i32 : i32
    %20 = tpu.iota {dimensions = array<i32: 0>} : vector<8x1xi32>
    %21 = vector.broadcast %19 : i32 to vector<8x1xi32>
    %22 = arith.addi %21, %20 : vector<8x1xi32>
    %c8_i32_8 = arith.constant 8 : i32
    %23 = vector.broadcast %c8_i32_8 : i32 to vector<8x1xi32>
    %24 = arith.cmpi slt, %22, %23 : vector<8x1xi32>
    %cst_9 = arith.constant 0.000000e+00 : f32
    %25 = vector.broadcast %cst_9 : f32 to vector<8x1xf32>
    %26 = arith.select %24, %18, %25 : vector<8x1xi1>, vector<8x1xf32>
    %27 = vector.shape_cast %26 : vector<8x1xf32> to vector<1x8x1xf32>
    %cst_10 = arith.constant dense<0.000000e+00> : vector<1xf32>
    %28 = vector.multi_reduction <add>, %27, %cst_10 [1, 2] : vector<1x8x1xf32> to vector<1xf32>
    %29 = vector.shape_cast %28 : vector<1xf32> to vector<1x1x1xf32>
    %30 = vector.extract %29[0, 0, 0] : f32 from vector<1x1x1xf32>
    %31 = vector.broadcast %30 : f32 to vector<1x8x128xf32>
    %c0_11 = arith.constant 0 : index
    %c0_12 = arith.constant 0 : index
    %c0_13 = arith.constant 0 : index
    %32 = vector.load %arg4[%c0_11, %c0_12, %c0_13] : memref<1x8x128xf32, #tpu.memory_space<vmem>>, vector<1x8x128xf32>
    tpu.vector_store %arg4[%c0_11, %c0_12, %c0_13], %31 {strides = array<i32>} : memref<1x8x128xf32, #tpu.memory_space<vmem>>, vector<1x8x128xf32>,
    return
  }
  func.func @transform_0(%arg0: i32) -> i32 {
    %c0_i32 = arith.constant 0 : i32
    %c0_i32_0 = arith.constant 0 : i32
    return %c0_i32 : i32
  }
  func.func @transform_1(%arg0: i32) -> (i32, i32) {
    %c0_i32 = arith.constant 0 : i32
    %c0_i32_0 = arith.constant 0 : i32
    return %arg0, %c0_i32 : i32, i32
  }
  func.func @transform_2(%arg0: i32) -> (i32, i32) {
    %c0_i32 = arith.constant 0 : i32
    %c0_i32_0 = arith.constant 0 : i32
    return %arg0, %c0_i32 : i32, i32
  }
  func.func @transform_3(%arg0: i32) -> (i32, i32, i32) {
    %c0_i32 = arith.constant 0 : i32
    %c0_i32_0 = arith.constant 0 : i32
    %c0_i32_1 = arith.constant 0 : i32
    return %arg0, %c0_i32, %c0_i32_0 : i32, i32, i32
  }
}

</mosaic_0001>

<llo_original>
// kernel: tpu_custom_call.1
$region0: #{tpu_custom_call.1}
  #allocation0 [shape = 'u32[]', space=smem, size = 0x4, offset = 0x4, fixed_abs, tag = 'smem constant byte address 0x4 - core index']
  #allocation1 [shape = 'u32[144,128]{1,0:T(1,128)}', space=vmem, size = 0x12000, scoped, tag = 'internal scratch']
  #allocation2 [shape = 'f32[1]{0:T(128)S(6)}', space=smem, size = 0x200, scoped, tag = 'scoped memory for tpu_custom_call.1']
  %s0 = inlined_call_operand.<no memory space> [shape: f32[1], index: 0, kind: input, shape index: {}]
  %s1 = inlined_call_operand.vmem [shape: f32[8,16], index: 1, kind: input, shape index: {}]
  %s2 = inlined_call_operand.vmem [shape: s32[8,1], index: 2, kind: input, shape index: {}]
  %s3 = inlined_call_operand.hbm [shape: f32[1,8,128], index: 3, kind: output, shape index: {}]
  %s4 = sld [smem:[#allocation0]]
  $region22: #{tpu_custom_call.1} parent=0
    _
  %s6 = ssub.s32 1, %s4
  %s7 = scalar_select 0, %s6, %s4
  %8 = sst [smem:[#allocation2]] %s0
  $region1: #{tpu_custom_call.1} parent=0
    #allocation3 [shape = 'u8[4096]{0}', space=vmem, size = 0x1000, scoped, tag = 'output window, operand 0, single buffered']
    #allocation4 [shape = 's32[1]{0}', space=sflag, size = 0x4, scoped, tag = 'scoped memory for tpu_custom_call.1']
    %9 = vsyncpa [#allocation4], 0
    // Predicated region
    $region2: #{tpu_custom_call.1} parent=1 // pred_check
      _
    $region3: #{tpu_custom_call.1} parent=1 // pred_check_branch
      %11 = sbr.rel (0) target = $region5
    $region4: #{tpu_custom_call.1} parent=1 // pred_region
      _
    $region5: #{tpu_custom_call.1} parent=1 // pred_fallthru
      _
    // Predicated region
    $region6: #{tpu_custom_call.1} parent=1 // pred_check
      _
    $region7: #{tpu_custom_call.1} parent=1 // pred_check_branch
      %13 = sbr.rel (0) target = $region9
    $region8: #{tpu_custom_call.1} parent=1 // pred_region
      _
    $region9: #{tpu_custom_call.1} parent=1 // pred_fallthru
      _
    // Predicated region
    $region10: #{tpu_custom_call.1} parent=1 // pred_check
      _
    $region11: #{tpu_custom_call.1} parent=1 // pred_check_branch
      %15 = sbr.rel (0) target = $region13
    $region12: #{tpu_custom_call.1} parent=1 // pred_region
      _
    $region13: #{tpu_custom_call.1} parent=1 // pred_fallthru
      _
    %v16 = vld [vmem:[%s1] sm:$0xff]
    %v17 = vld [vmem:[%s2] sm:$0xff]
    %s18 = sld [smem:[#allocation2]]
    %v19 = vlaneseq
    %v20 = vand.u32 %v19, 127
    %21 = vset.pattern.permute.xlu0 0
    %22 = vperm.xlu0 %21, %v17
    %v23 = vpop.permute.xlu0 %22
    %vm24 = vcmp.eq.s32.totalorder %v20, %v23
    %v25 = vsel %vm24, %v16, 0.0
    %vm26 = vcmask 130048
    %v27 = vsel %vm26, %v25, 0.0
    %28 = vadd.xlane.f32.xlu0 %v27
    %v29 = vpop.xlane.xlu0 %28
    %v30 = vsel %vm24, 0.0, %v16
    %v31 = vsel %vm26, %v30, -inf
    %32 = vmax.xlane.f32.xlu0 %v31
    %v33 = vpop.xlane.xlu0 %32
    %v34 = vsub.f32 %v29, %v33
    %v35 = vstv %s18
    %v36 = vadd.f32 %v34, %v35
    %v37 = vmax.f32 %v36, 0.0
    %s38 = smul.u32 0, 8
    %v39 = vlaneseq
    %v40 = vshrl.u32 %v39, 7
    %v41 = vstv %s38
    %v42 = vadd.s32 %v41, %v40
    %vm43 = vcmp.lt.s32.totalorder %v42, 8
    %v44 = vsel %vm43, %v37, 0.0
    %vm45 = vcmask 7168
    %v46 = vsel %vm45, %v44, 0.0
    %47 = vadd.xlane.f32.xlu0 %v46
    %v48 = vpop.xlane.xlu0 %47
    %v49 = vrot.slane %v48, 4
    %v50 = vadd.f32 %v48, %v49
    %v51 = vrot.slane %v50, 2
    %v52 = vadd.f32 %v50, %v51
    %v53 = vrot.slane %v52, 1
    %v54 = vadd.f32 %v52, %v53
    %s55 = vtos %v54
    %v56 = vstv %s55
    %57 = vst [vmem:[#allocation3] sm:$0xff] %v56
    // Predicated region
    $region14: #{tpu_custom_call.1} parent=1 // pred_check
      _
    $region15: #{tpu_custom_call.1} parent=1 // pred_check_branch
      %59 = sbr.rel (0) target = $region17
    $region16: #{tpu_custom_call.1} parent=1 // pred_region
      %s61 = ssub.s32 128, 128
      %62 = vsyncadd [#allocation4], %s61
      %s64 = sshll.u32 [#allocation3], 4
      %s65 = int_to_ptr.vmem [resolvable:$true] %s64
      %67 = dma.vmem_to_hbm [thread:$0]  %s65, 128, %s3, [#allocation4]
    $region17: #{tpu_custom_call.1} parent=1 // pred_fallthru
      _
    // Predicated region
    $region18: #{tpu_custom_call.1} parent=1 // pred_check
      _
    $region19: #{tpu_custom_call.1} parent=1 // pred_check_branch
      %69 = sbr.rel (0) target = $region21
    $region20: #{tpu_custom_call.1} parent=1 // pred_region
      %70 = dma.done [#allocation4], 128
    $region21: #{tpu_custom_call.1} parent=1 // pred_fallthru
      _
    %71 = vsyncpa [#allocation4], 1

</llo_original>
